<compile_context>
chip_gen: v6e
topology: v6e:2x2x1
jax: 0.10.0
libtpu: 0.0.40
codegen_flags: <defaults>
</compile_context>

<pallas_src>
import jax
import jax.numpy as jnp
from jax.experimental import pallas as pl
from jax.experimental.pallas import tpu as pltpu

# Hyperparameters (the module's globals).
EMBEDDING_DIM = 16
H_DIM = 32
MLP_DIM = 64

_G = 4 * H_DIM                        # 128 gate lanes = one full vreg lane group


def _round_up(x, m):
    return (x + m - 1) // m * m


# Packed-parameter slab row layout (all rows 128 lanes wide, f32, 8-row aligned
# blocks so every in-kernel matmul operand slice starts on a sublane boundary):
_R_WF = 0                                   # rows 0..1 : folded input weights (2, 4H)
_R_BF = 2                                   # row  2    : folded bias
_R_WHH = _round_up(_R_BF + 1, 8)            # rows 8..39 : W_hh (H, 4H)
_R_W1 = _round_up(_R_WHH + H_DIM, 8)        # rows 40..71: W1 zero-padded to 128 lanes
_R_B1 = _R_W1 + H_DIM                       # row 72 : b1
_R_W2 = _R_B1 + 1                           # row 73 : w2 (Linear(MLP_DIM, 1) row)
_R_B2 = _R_W2 + 1                           # row 74 : b2 (lane 0)
_SLAB_ROWS = _round_up(_R_B2 + 1, 8)        # 80
_SLAB_COLS = 128
assert _G <= _SLAB_COLS and MLP_DIM <= _SLAB_COLS


def _discriminator_kernel(x_ref, slab_ref, out_ref):
    """x_ref: (S*N, 2) relative displacements (seq-major flatten);
       slab_ref: (80, 128) packed parameters; out_ref: (N, 1) scores."""
    SN = x_ref.shape[0]
    N = out_ref.shape[0]
    S = SN // N
    H = H_DIM
    G = 4 * H
    f32 = jnp.float32
    bf16 = jnp.bfloat16

    # ---- One-time parameter loads, hoisted out of the unrolled recurrence.
    #      MXU weights are cast to bf16 once so each recurrent matmul is a
    #      single native MXU pass (f32 accumulation). ---------------------------
    w_fold = slab_ref[_R_WF:_R_WF + 2, :]                       # (2, G)
    b_fold = slab_ref[_R_BF:_R_BF + 1, :]                       # (1, G)
    w_hh_bf = slab_ref[_R_WHH:_R_WHH + H, :].astype(bf16)       # (H, G)
    w1_bf = slab_ref[_R_W1:_R_W1 + H, :].astype(bf16)           # (H, 128), lanes >= MLP_DIM are 0
    b1 = slab_ref[_R_B1:_R_B1 + 1, :]                           # (1, 128)
    w2 = slab_ref[_R_W2:_R_W2 + 1, :]                           # (1, 128)
    b2 = slab_ref[_R_B2:_R_B2 + 1, 0:1]                         # (1, 1)

    # ---- Hoisted input projection for ALL timesteps: one lane-dense MXU pass
    #      (spatial embedding already folded into w_fold / b_fold). -------------
    x_proj = (jnp.dot(x_ref[...], w_fold, preferred_element_type=f32)
              + b_fold)                                         # (S*N, G)

    # ---- Fused gate activations: one full-width tanh per step.
    #      PyTorch gate order (i, f, g, o); sigmoid(x) = 0.5*tanh(0.5*x) + 0.5
    #      on the i/f/o lanes, plain tanh on the g lanes. Masks hoisted once. ---
    lane = jax.lax.broadcasted_iota(jnp.int32, (1, G), 1)
    is_g = jnp.logical_and(lane >= 2 * H, lane < 3 * H)
    pre = jnp.where(is_g, 1.0, 0.5).astype(f32)                 # tanh pre/post scale
    off = jnp.where(is_g, 0.0, 0.5).astype(f32)                 # sigmoid offset

    # ---- LSTM recurrence, fully unrolled (S static). Only h @ W_hh sits on the
    #      serial critical path; step 0 skips it entirely (h0 = c0 = 0). --------
    h = None
    c = None
    for t in range(S):
        xg = x_proj[t * N:(t + 1) * N, :]                       # static slice, off crit path
        if t == 0:
            gates = xg
        else:
            gates = xg + jnp.dot(h.astype(bf16), w_hh_bf,
                                 preferred_element_type=f32)    # (N, G)
        act = jnp.tanh(gates * pre) * pre + off                 # single full-width EUP pass
        i_g = act[:, 0 * H:1 * H]
        f_g = act[:, 1 * H:2 * H]
        g_g = act[:, 2 * H:3 * H]
        o_g = act[:, 3 * H:4 * H]
        c = i_g * g_g if t == 0 else f_g * c + i_g * g_g
        h = o_g * jnp.tanh(c)

    # ---- real_classifier: Linear(H, MLP) + ReLU + Linear(MLP, 1) + ReLU.
    #      W1/b1/w2 are zero-padded to 128 lanes so no sub-lane slicing is
    #      needed; the final (MLP -> 1) projection is a VPU multiply + lane
    #      reduction instead of a 1-output-column MXU matmul. -------------------
    z1 = jnp.maximum(jnp.dot(h.astype(bf16), w1_bf,
                             preferred_element_type=f32) + b1, 0.0)   # (N, 128)
    s = jnp.sum(z1 * w2, axis=-1, keepdims=True)                      # (N, 1)
    out_ref[...] = jnp.maximum(s + b2, 0.0)


def pack_params(params):
    """Fold the spatial embedding into the LSTM input projection and pack every
    parameter the kernel needs into one (80, 128) f32 slab (a single DMA)."""
    hp = jax.lax.Precision.HIGHEST
    w_fold = jnp.dot(params["w_emb"], params["w_ih"], precision=hp)          # (2, 4H)
    b_fold = (jnp.dot(params["b_emb"], params["w_ih"], precision=hp)
              + params["b_ih"] + params["b_hh"])                             # (1, 4H)
    slab = jnp.zeros((_SLAB_ROWS, _SLAB_COLS), jnp.float32)
    slab = slab.at[_R_WF:_R_WF + 2, :_G].set(w_fold)
    slab = slab.at[_R_BF, :_G].set(b_fold[0])
    slab = slab.at[_R_WHH:_R_WHH + H_DIM, :_G].set(params["w_hh"])
    slab = slab.at[_R_W1:_R_W1 + H_DIM, :MLP_DIM].set(params["w1"])
    slab = slab.at[_R_B1, :MLP_DIM].set(params["b1"][0])
    slab = slab.at[_R_W2, :MLP_DIM].set(params["w2"][0])
    slab = slab.at[_R_B2, 0].set(params["b2"][0, 0])
    return slab


def trajectory_discriminator(traj, traj_rel, packed_params):
    """traj: (S, N, 2) -- unused by the forward pass (kept for API parity).
       traj_rel: (S, N, 2). packed_params: output of pack_params().
       Returns scores of shape (N, 1)."""
    del traj  # forward only consumes traj_rel
    S, N, _ = traj_rel.shape
    x = traj_rel.reshape(S * N, 2)                 # seq-major flatten (metadata only)
    vmem = pl.BlockSpec(memory_space=pltpu.MemorySpace.VMEM)

    G = _G
    flops = (2 * S * N * 2 * G + S * N * G                     # hoisted input projection
             + (S - 1) * 2 * N * H_DIM * G                     # recurrent matmuls (t>0)
             + S * (5 * N * G + 6 * N * H_DIM)                 # gate fuse + state update
             + 2 * N * H_DIM * 128 + 4 * N * 128)              # classifier
    transcendentals = S * N * (G + H_DIM)
    bytes_accessed = (x.size + packed_params.size + N) * 4

    # Single scene -> gridless call (one TensorCore). For batched scenes, add a
    # leading grid axis with dimension_semantics=("parallel",) to use both v7x TCs.
    return pl.pallas_call(
        _discriminator_kernel,
        out_shape=jax.ShapeDtypeStruct((N, 1), jnp.float32),
        in_specs=[vmem, vmem],
        out_specs=vmem,
        compiler_params=pltpu.CompilerParams(vmem_limit_bytes=4 * 1024 * 1024),
        cost_estimate=pl.CostEstimate(flops=flops,
                                      transcendentals=transcendentals,
                                      bytes_accessed=bytes_accessed),
    )(x, packed_params)


def init_params(key):
    """Deterministic synthetic parameters matching the PyTorch module.
    Matmul weights are stored (in, out) so matmuls are x @ W; w2 is the
    Linear(MLP_DIM, 1) weight in its native (1, MLP_DIM) row layout."""
    ks = jax.random.split(key, 10)
    u = lambda k, shape, s: jax.random.uniform(k, shape, jnp.float32, -s, s)
    E, H, M = EMBEDDING_DIM, H_DIM, MLP_DIM
    return {
        # spatial_embedding: nn.Linear(2, E)
        "w_emb": u(ks[0], (2, E), 0.5),
        "b_emb": u(ks[1], (1, E), 0.5),
        # nn.LSTM(E, H, 1): weight_ih (4H, E) / weight_hh (4H, H) -> transposed
        "w_ih": u(ks[2], (E, 4 * H), 1.0 / jnp.sqrt(H)),
        "w_hh": u(ks[3], (H, 4 * H), 1.0 / jnp.sqrt(H)),
        "b_ih": u(ks[4], (1, 4 * H), 1.0 / jnp.sqrt(H)),
        "b_hh": u(ks[5], (1, 4 * H), 1.0 / jnp.sqrt(H)),
        # real_classifier: Linear(H, M), Linear(M, 1)
        "w1": u(ks[6], (H, M), 1.0 / jnp.sqrt(H)),
        "b1": u(ks[7], (1, M), 1.0 / jnp.sqrt(H)),
        "w2": u(ks[8], (1, M), 1.0 / jnp.sqrt(M)),
        "b2": u(ks[9], (1, 1), 1.0 / jnp.sqrt(M)),
    }


def _reference_forward(traj_rel, params):
    """Pure-JAX (non-Pallas) reference with the exact PyTorch semantics."""
    S, N, _ = traj_rel.shape
    E, H = EMBEDDING_DIM, H_DIM
    dot = lambda a, b: jnp.dot(a, b, precision=jax.lax.Precision.HIGHEST)
    emb = (dot(traj_rel.reshape(S * N, 2), params["w_emb"])
           + params["b_emb"]).reshape(S, N, E)
    bias = params["b_ih"] + params["b_hh"]
    h = jnp.zeros((N, H), jnp.float32)
    c = jnp.zeros((N, H), jnp.float32)
    for t in range(S):
        gates = dot(emb[t], params["w_ih"]) + dot(h, params["w_hh"]) + bias
        i = jax.nn.sigmoid(gates[:, 0 * H:1 * H])
        f = jax.nn.sigmoid(gates[:, 1 * H:2 * H])
        g = jnp.tanh(gates[:, 2 * H:3 * H])
        o = jax.nn.sigmoid(gates[:, 3 * H:4 * H])
        c = f * c + i * g
        h = o * jnp.tanh(c)
    z1 = jnp.maximum(dot(h, params["w1"]) + params["b1"], 0.0)
    scores = jnp.maximum(dot(z1, params["w2"].T) + params["b2"], 0.0)
    return scores


if __name__ == "__main__":
    key = jax.random.PRNGKey(0)
    k_p, k_t, k_r = jax.random.split(key, 3)

    SEQ_LEN = 8
    NPEDS = 4

    params = init_params(k_p)
    slab = pack_params(params)           # one-time fold + pack (not per call)
    traj = jax.random.normal(k_t, (SEQ_LEN, NPEDS, 2), jnp.float32)
    traj_rel = jax.random.normal(k_r, (SEQ_LEN, NPEDS, 2), jnp.float32)

    scores = trajectory_discriminator(traj, traj_rel, slab)
    scores = jax.block_until_ready(scores)
    assert scores.shape == (NPEDS, 1), scores.shape

    # Pure-JAX reference check. Tolerance covers the embedding/bias fold and the
    # bf16 single-pass MXU operands (recurrent + classifier matmuls), which add
    # ~1e-3..1e-2 of rounding vs. the HIGHEST-precision f32 reference.
    ref = jax.block_until_ready(_reference_forward(traj_rel, params))
    err = float(jnp.max(jnp.abs(scores - ref)))
    assert err < 3e-2, f"kernel/reference mismatch: max abs err = {err}"

    print("KERNEL_OK")
</pallas_src>

<mosaic_0001>
module attributes {stable_mosaic.version = 11 : i64} {
  func.func @_discriminator_kernel(%arg0: memref<32x2xf32, #tpu.memory_space<vmem>>, %arg1: memref<80x128xf32, #tpu.memory_space<vmem>>, %arg2: memref<4x1xf32, #tpu.memory_space<vmem>>) attributes {dimension_semantics = [], scalar_prefetch = 0 : i64, scratch_operands = 0 : i64, tpu.core_type = #tpu.core_type<tc>} {
    %c0 = arith.constant 0 : index
    %c0_0 = arith.constant 0 : index
    %0 = vector.load %arg1[%c0, %c0_0] : memref<80x128xf32, #tpu.memory_space<vmem>>, vector<2x128xf32>
    %c2 = arith.constant 2 : index
    %c0_1 = arith.constant 0 : index
    %1 = vector.load %arg1[%c2, %c0_1] : memref<80x128xf32, #tpu.memory_space<vmem>>, vector<1x128xf32>
    %c8 = arith.constant 8 : index
    %c0_2 = arith.constant 0 : index
    %2 = vector.load %arg1[%c8, %c0_2] : memref<80x128xf32, #tpu.memory_space<vmem>>, vector<32x128xf32>
    %3 = arith.truncf %2 : vector<32x128xf32> to vector<32x128xbf16>
    %c40 = arith.constant 40 : index
    %c0_3 = arith.constant 0 : index
    %4 = vector.load %arg1[%c40, %c0_3] : memref<80x128xf32, #tpu.memory_space<vmem>>, vector<32x128xf32>
    %5 = arith.truncf %4 : vector<32x128xf32> to vector<32x128xbf16>
    %c72 = arith.constant 72 : index
    %c0_4 = arith.constant 0 : index
    %6 = vector.load %arg1[%c72, %c0_4] : memref<80x128xf32, #tpu.memory_space<vmem>>, vector<1x128xf32>
    %c73 = arith.constant 73 : index
    %c0_5 = arith.constant 0 : index
    %7 = vector.load %arg1[%c73, %c0_5] : memref<80x128xf32, #tpu.memory_space<vmem>>, vector<1x128xf32>
    %c74 = arith.constant 74 : index
    %c0_6 = arith.constant 0 : index
    %8 = vector.load %arg1[%c74, %c0_6] : memref<80x128xf32, #tpu.memory_space<vmem>>, vector<1x1xf32>
    %c0_7 = arith.constant 0 : index
    %c0_8 = arith.constant 0 : index
    %9 = vector.load %arg0[%c0_7, %c0_8] : memref<32x2xf32, #tpu.memory_space<vmem>>, vector<32x2xf32>
    %cst = arith.constant dense<0.000000e+00> : vector<32x128xf32>
    %10 = tpu.matmul %9, %0, %cst {dimension_numbers = #tpu.dot_dimension_numbers<[1], [0], [0], [1], [0, 0, 1, 1], [], []>} : vector<32x2xf32>, vector<2x128xf32>, vector<32x128xf32> -> vector<32x128xf32>
    %11 = vector.broadcast %1 : vector<1x128xf32> to vector<32x128xf32>
    %12 = arith.addf %10, %11 : vector<32x128xf32>
    %13 = tpu.iota {dimensions = array<i32: 1>} : vector<1x128xi32>
    %c64_i32 = arith.constant 64 : i32
    %14 = vector.broadcast %c64_i32 : i32 to vector<1x128xi32>
    %15 = arith.cmpi sge, %13, %14 : vector<1x128xi32>
    %c96_i32 = arith.constant 96 : i32
    %16 = vector.broadcast %c96_i32 : i32 to vector<1x128xi32>
    %17 = arith.cmpi slt, %13, %16 : vector<1x128xi32>
    %18 = arith.andi %15, %17 : vector<1x128xi1>
    %cst_9 = arith.constant 1.000000e+00 : f32
    %cst_10 = arith.constant 5.000000e-01 : f32
    %19 = vector.broadcast %cst_9 : f32 to vector<1x128xf32>
    %20 = vector.broadcast %cst_10 : f32 to vector<1x128xf32>
    %21 = arith.select %18, %19, %20 : vector<1x128xi1>, vector<1x128xf32>
    %cst_11 = arith.constant 0.000000e+00 : f32
    %cst_12 = arith.constant 5.000000e-01 : f32
    %22 = vector.broadcast %cst_11 : f32 to vector<1x128xf32>
    %23 = vector.broadcast %cst_12 : f32 to vector<1x128xf32>
    %24 = arith.select %18, %22, %23 : vector<1x128xi1>, vector<1x128xf32>
    %25 = vector.extract_strided_slice %12 {offsets = [0, 0], sizes = [4, 128], strides = [1, 1]} : vector<32x128xf32> to vector<4x128xf32>
    %26 = vector.broadcast %21 : vector<1x128xf32> to vector<4x128xf32>
    %27 = arith.mulf %25, %26 : vector<4x128xf32>
    %28 = math.tanh %27 : vector<4x128xf32>
    %29 = vector.broadcast %21 : vector<1x128xf32> to vector<4x128xf32>
    %30 = arith.mulf %28, %29 : vector<4x128xf32>
    %31 = vector.broadcast %24 : vector<1x128xf32> to vector<4x128xf32>
    %32 = arith.addf %30, %31 : vector<4x128xf32>
    %33 = vector.extract_strided_slice %32 {offsets = [0, 0], sizes = [4, 32], strides = [1, 1]} : vector<4x128xf32> to vector<4x32xf32>
    %34 = vector.extract_strided_slice %32 {offsets = [0, 64], sizes = [4, 32], strides = [1, 1]} : vector<4x128xf32> to vector<4x32xf32>
    %35 = vector.extract_strided_slice %32 {offsets = [0, 96], sizes = [4, 32], strides = [1, 1]} : vector<4x128xf32> to vector<4x32xf32>
    %36 = arith.mulf %33, %34 : vector<4x32xf32>
    %37 = math.tanh %36 : vector<4x32xf32>
    %38 = arith.mulf %35, %37 : vector<4x32xf32>
    %39 = vector.extract_strided_slice %12 {offsets = [4, 0], sizes = [4, 128], strides = [1, 1]} : vector<32x128xf32> to vector<4x128xf32>
    %40 = arith.truncf %38 : vector<4x32xf32> to vector<4x32xbf16>
    %cst_13 = arith.constant dense<0.000000e+00> : vector<4x128xf32>
    %41 = tpu.matmul %40, %3, %cst_13 {dimension_numbers = #tpu.dot_dimension_numbers<[1], [0], [0], [1], [0, 0, 1, 1], [], []>} : vector<4x32xbf16>, vector<32x128xbf16>, vector<4x128xf32> -> vector<4x128xf32>
    %42 = arith.addf %39, %41 : vector<4x128xf32>
    %43 = vector.broadcast %21 : vector<1x128xf32> to vector<4x128xf32>
    %44 = arith.mulf %42, %43 : vector<4x128xf32>
    %45 = math.tanh %44 : vector<4x128xf32>
    %46 = vector.broadcast %21 : vector<1x128xf32> to vector<4x128xf32>
    %47 = arith.mulf %45, %46 : vector<4x128xf32>
    %48 = vector.broadcast %24 : vector<1x128xf32> to vector<4x128xf32>
    %49 = arith.addf %47, %48 : vector<4x128xf32>
    %50 = vector.extract_strided_slice %49 {offsets = [0, 0], sizes = [4, 32], strides = [1, 1]} : vector<4x128xf32> to vector<4x32xf32>
    %51 = vector.extract_strided_slice %49 {offsets = [0, 32], sizes = [4, 32], strides = [1, 1]} : vector<4x128xf32> to vector<4x32xf32>
    %52 = vector.extract_strided_slice %49 {offsets = [0, 64], sizes = [4, 32], strides = [1, 1]} : vector<4x128xf32> to vector<4x32xf32>
    %53 = vector.extract_strided_slice %49 {offsets = [0, 96], sizes = [4, 32], strides = [1, 1]} : vector<4x128xf32> to vector<4x32xf32>
    %54 = arith.mulf %51, %36 : vector<4x32xf32>
    %55 = arith.mulf %50, %52 : vector<4x32xf32>
    %56 = arith.addf %54, %55 : vector<4x32xf32>
    %57 = math.tanh %56 : vector<4x32xf32>
    %58 = arith.mulf %53, %57 : vector<4x32xf32>
    %59 = vector.extract_strided_slice %12 {offsets = [8, 0], sizes = [4, 128], strides = [1, 1]} : vector<32x128xf32> to vector<4x128xf32>
    %60 = arith.truncf %58 : vector<4x32xf32> to vector<4x32xbf16>
    %cst_14 = arith.constant dense<0.000000e+00> : vector<4x128xf32>
    %61 = tpu.matmul %60, %3, %cst_14 {dimension_numbers = #tpu.dot_dimension_numbers<[1], [0], [0], [1], [0, 0, 1, 1], [], []>} : vector<4x32xbf16>, vector<32x128xbf16>, vector<4x128xf32> -> vector<4x128xf32>
    %62 = arith.addf %59, %61 : vector<4x128xf32>
    %63 = vector.broadcast %21 : vector<1x128xf32> to vector<4x128xf32>
    %64 = arith.mulf %62, %63 : vector<4x128xf32>
    %65 = math.tanh %64 : vector<4x128xf32>
    %66 = vector.broadcast %21 : vector<1x128xf32> to vector<4x128xf32>
    %67 = arith.mulf %65, %66 : vector<4x128xf32>
    %68 = vector.broadcast %24 : vector<1x128xf32> to vector<4x128xf32>
    %69 = arith.addf %67, %68 : vector<4x128xf32>
    %70 = vector.extract_strided_slice %69 {offsets = [0, 0], sizes = [4, 32], strides = [1, 1]} : vector<4x128xf32> to vector<4x32xf32>
    %71 = vector.extract_strided_slice %69 {offsets = [0, 32], sizes = [4, 32], strides = [1, 1]} : vector<4x128xf32> to vector<4x32xf32>
    %72 = vector.extract_strided_slice %69 {offsets = [0, 64], sizes = [4, 32], strides = [1, 1]} : vector<4x128xf32> to vector<4x32xf32>
    %73 = vector.extract_strided_slice %69 {offsets = [0, 96], sizes = [4, 32], strides = [1, 1]} : vector<4x128xf32> to vector<4x32xf32>
    %74 = arith.mulf %71, %56 : vector<4x32xf32>
    %75 = arith.mulf %70, %72 : vector<4x32xf32>
    %76 = arith.addf %74, %75 : vector<4x32xf32>
    %77 = math.tanh %76 : vector<4x32xf32>
    %78 = arith.mulf %73, %77 : vector<4x32xf32>
    %79 = vector.extract_strided_slice %12 {offsets = [12, 0], sizes = [4, 128], strides = [1, 1]} : vector<32x128xf32> to vector<4x128xf32>
    %80 = arith.truncf %78 : vector<4x32xf32> to vector<4x32xbf16>
    %cst_15 = arith.constant dense<0.000000e+00> : vector<4x128xf32>
    %81 = tpu.matmul %80, %3, %cst_15 {dimension_numbers = #tpu.dot_dimension_numbers<[1], [0], [0], [1], [0, 0, 1, 1], [], []>} : vector<4x32xbf16>, vector<32x128xbf16>, vector<4x128xf32> -> vector<4x128xf32>
    %82 = arith.addf %79, %81 : vector<4x128xf32>
    %83 = vector.broadcast %21 : vector<1x128xf32> to vector<4x128xf32>
    %84 = arith.mulf %82, %83 : vector<4x128xf32>
    %85 = math.tanh %84 : vector<4x128xf32>
    %86 = vector.broadcast %21 : vector<1x128xf32> to vector<4x128xf32>
    %87 = arith.mulf %85, %86 : vector<4x128xf32>
    %88 = vector.broadcast %24 : vector<1x128xf32> to vector<4x128xf32>
    %89 = arith.addf %87, %88 : vector<4x128xf32>
    %90 = vector.extract_strided_slice %89 {offsets = [0, 0], sizes = [4, 32], strides = [1, 1]} : vector<4x128xf32> to vector<4x32xf32>
    %91 = vector.extract_strided_slice %89 {offsets = [0, 32], sizes = [4, 32], strides = [1, 1]} : vector<4x128xf32> to vector<4x32xf32>
    %92 = vector.extract_strided_slice %89 {offsets = [0, 64], sizes = [4, 32], strides = [1, 1]} : vector<4x128xf32> to vector<4x32xf32>
    %93 = vector.extract_strided_slice %89 {offsets = [0, 96], sizes = [4, 32], strides = [1, 1]} : vector<4x128xf32> to vector<4x32xf32>
    %94 = arith.mulf %91, %76 : vector<4x32xf32>
    %95 = arith.mulf %90, %92 : vector<4x32xf32>
    %96 = arith.addf %94, %95 : vector<4x32xf32>
    %97 = math.tanh %96 : vector<4x32xf32>
    %98 = arith.mulf %93, %97 : vector<4x32xf32>
    %99 = vector.extract_strided_slice %12 {offsets = [16, 0], sizes = [4, 128], strides = [1, 1]} : vector<32x128xf32> to vector<4x128xf32>
    %100 = arith.truncf %98 : vector<4x32xf32> to vector<4x32xbf16>
    %cst_16 = arith.constant dense<0.000000e+00> : vector<4x128xf32>
    %101 = tpu.matmul %100, %3, %cst_16 {dimension_numbers = #tpu.dot_dimension_numbers<[1], [0], [0], [1], [0, 0, 1, 1], [], []>} : vector<4x32xbf16>, vector<32x128xbf16>, vector<4x128xf32> -> vector<4x128xf32>
    %102 = arith.addf %99, %101 : vector<4x128xf32>
    %103 = vector.broadcast %21 : vector<1x128xf32> to vector<4x128xf32>
    %104 = arith.mulf %102, %103 : vector<4x128xf32>
    %105 = math.tanh %104 : vector<4x128xf32>
    %106 = vector.broadcast %21 : vector<1x128xf32> to vector<4x128xf32>
    %107 = arith.mulf %105, %106 : vector<4x128xf32>
    %108 = vector.broadcast %24 : vector<1x128xf32> to vector<4x128xf32>
    %109 = arith.addf %107, %108 : vector<4x128xf32>
    %110 = vector.extract_strided_slice %109 {offsets = [0, 0], sizes = [4, 32], strides = [1, 1]} : vector<4x128xf32> to vector<4x32xf32>
    %111 = vector.extract_strided_slice %109 {offsets = [0, 32], sizes = [4, 32], strides = [1, 1]} : vector<4x128xf32> to vector<4x32xf32>
    %112 = vector.extract_strided_slice %109 {offsets = [0, 64], sizes = [4, 32], strides = [1, 1]} : vector<4x128xf32> to vector<4x32xf32>
    %113 = vector.extract_strided_slice %109 {offsets = [0, 96], sizes = [4, 32], strides = [1, 1]} : vector<4x128xf32> to vector<4x32xf32>
    %114 = arith.mulf %111, %96 : vector<4x32xf32>
    %115 = arith.mulf %110, %112 : vector<4x32xf32>
    %116 = arith.addf %114, %115 : vector<4x32xf32>
    %117 = math.tanh %116 : vector<4x32xf32>
    %118 = arith.mulf %113, %117 : vector<4x32xf32>
    %119 = vector.extract_strided_slice %12 {offsets = [20, 0], sizes = [4, 128], strides = [1, 1]} : vector<32x128xf32> to vector<4x128xf32>
    %120 = arith.truncf %118 : vector<4x32xf32> to vector<4x32xbf16>
    %cst_17 = arith.constant dense<0.000000e+00> : vector<4x128xf32>
    %121 = tpu.matmul %120, %3, %cst_17 {dimension_numbers = #tpu.dot_dimension_numbers<[1], [0], [0], [1], [0, 0, 1, 1], [], []>} : vector<4x32xbf16>, vector<32x128xbf16>, vector<4x128xf32> -> vector<4x128xf32>
    %122 = arith.addf %119, %121 : vector<4x128xf32>
    %123 = vector.broadcast %21 : vector<1x128xf32> to vector<4x128xf32>
    %124 = arith.mulf %122, %123 : vector<4x128xf32>
    %125 = math.tanh %124 : vector<4x128xf32>
    %126 = vector.broadcast %21 : vector<1x128xf32> to vector<4x128xf32>
    %127 = arith.mulf %125, %126 : vector<4x128xf32>
    %128 = vector.broadcast %24 : vector<1x128xf32> to vector<4x128xf32>
    %129 = arith.addf %127, %128 : vector<4x128xf32>
    %130 = vector.extract_strided_slice %129 {offsets = [0, 0], sizes = [4, 32], strides = [1, 1]} : vector<4x128xf32> to vector<4x32xf32>
    %131 = vector.extract_strided_slice %129 {offsets = [0, 32], sizes = [4, 32], strides = [1, 1]} : vector<4x128xf32> to vector<4x32xf32>
    %132 = vector.extract_strided_slice %129 {offsets = [0, 64], sizes = [4, 32], strides = [1, 1]} : vector<4x128xf32> to vector<4x32xf32>
    %133 = vector.extract_strided_slice %129 {offsets = [0, 96], sizes = [4, 32], strides = [1, 1]} : vector<4x128xf32> to vector<4x32xf32>
    %134 = arith.mulf %131, %116 : vector<4x32xf32>
    %135 = arith.mulf %130, %132 : vector<4x32xf32>
    %136 = arith.addf %134, %135 : vector<4x32xf32>
    %137 = math.tanh %136 : vector<4x32xf32>
    %138 = arith.mulf %133, %137 : vector<4x32xf32>
    %139 = vector.extract_strided_slice %12 {offsets = [24, 0], sizes = [4, 128], strides = [1, 1]} : vector<32x128xf32> to vector<4x128xf32>
    %140 = arith.truncf %138 : vector<4x32xf32> to vector<4x32xbf16>
    %cst_18 = arith.constant dense<0.000000e+00> : vector<4x128xf32>
    %141 = tpu.matmul %140, %3, %cst_18 {dimension_numbers = #tpu.dot_dimension_numbers<[1], [0], [0], [1], [0, 0, 1, 1], [], []>} : vector<4x32xbf16>, vector<32x128xbf16>, vector<4x128xf32> -> vector<4x128xf32>
    %142 = arith.addf %139, %141 : vector<4x128xf32>
    %143 = vector.broadcast %21 : vector<1x128xf32> to vector<4x128xf32>
    %144 = arith.mulf %142, %143 : vector<4x128xf32>
    %145 = math.tanh %144 : vector<4x128xf32>
    %146 = vector.broadcast %21 : vector<1x128xf32> to vector<4x128xf32>
    %147 = arith.mulf %145, %146 : vector<4x128xf32>
    %148 = vector.broadcast %24 : vector<1x128xf32> to vector<4x128xf32>
    %149 = arith.addf %147, %148 : vector<4x128xf32>
    %150 = vector.extract_strided_slice %149 {offsets = [0, 0], sizes = [4, 32], strides = [1, 1]} : vector<4x128xf32> to vector<4x32xf32>
    %151 = vector.extract_strided_slice %149 {offsets = [0, 32], sizes = [4, 32], strides = [1, 1]} : vector<4x128xf32> to vector<4x32xf32>
    %152 = vector.extract_strided_slice %149 {offsets = [0, 64], sizes = [4, 32], strides = [1, 1]} : vector<4x128xf32> to vector<4x32xf32>
    %153 = vector.extract_strided_slice %149 {offsets = [0, 96], sizes = [4, 32], strides = [1, 1]} : vector<4x128xf32> to vector<4x32xf32>
    %154 = arith.mulf %151, %136 : vector<4x32xf32>
    %155 = arith.mulf %150, %152 : vector<4x32xf32>
    %156 = arith.addf %154, %155 : vector<4x32xf32>
    %157 = math.tanh %156 : vector<4x32xf32>
    %158 = arith.mulf %153, %157 : vector<4x32xf32>
    %159 = vector.extract_strided_slice %12 {offsets = [28, 0], sizes = [4, 128], strides = [1, 1]} : vector<32x128xf32> to vector<4x128xf32>
    %160 = arith.truncf %158 : vector<4x32xf32> to vector<4x32xbf16>
    %cst_19 = arith.constant dense<0.000000e+00> : vector<4x128xf32>
    %161 = tpu.matmul %160, %3, %cst_19 {dimension_numbers = #tpu.dot_dimension_numbers<[1], [0], [0], [1], [0, 0, 1, 1], [], []>} : vector<4x32xbf16>, vector<32x128xbf16>, vector<4x128xf32> -> vector<4x128xf32>
    %162 = arith.addf %159, %161 : vector<4x128xf32>
    %163 = vector.broadcast %21 : vector<1x128xf32> to vector<4x128xf32>
    %164 = arith.mulf %162, %163 : vector<4x128xf32>
    %165 = math.tanh %164 : vector<4x128xf32>
    %166 = vector.broadcast %21 : vector<1x128xf32> to vector<4x128xf32>
    %167 = arith.mulf %165, %166 : vector<4x128xf32>
    %168 = vector.broadcast %24 : vector<1x128xf32> to vector<4x128xf32>
    %169 = arith.addf %167, %168 : vector<4x128xf32>
    %170 = vector.extract_strided_slice %169 {offsets = [0, 0], sizes = [4, 32], strides = [1, 1]} : vector<4x128xf32> to vector<4x32xf32>
    %171 = vector.extract_strided_slice %169 {offsets = [0, 32], sizes = [4, 32], strides = [1, 1]} : vector<4x128xf32> to vector<4x32xf32>
    %172 = vector.extract_strided_slice %169 {offsets = [0, 64], sizes = [4, 32], strides = [1, 1]} : vector<4x128xf32> to vector<4x32xf32>
    %173 = vector.extract_strided_slice %169 {offsets = [0, 96], sizes = [4, 32], strides = [1, 1]} : vector<4x128xf32> to vector<4x32xf32>
    %174 = arith.mulf %171, %156 : vector<4x32xf32>
    %175 = arith.mulf %170, %172 : vector<4x32xf32>
    %176 = arith.addf %174, %175 : vector<4x32xf32>
    %177 = math.tanh %176 : vector<4x32xf32>
    %178 = arith.mulf %173, %177 : vector<4x32xf32>
    %179 = arith.truncf %178 : vector<4x32xf32> to vector<4x32xbf16>
    %cst_20 = arith.constant dense<0.000000e+00> : vector<4x128xf32>
    %180 = tpu.matmul %179, %5, %cst_20 {dimension_numbers = #tpu.dot_dimension_numbers<[1], [0], [0], [1], [0, 0, 1, 1], [], []>} : vector<4x32xbf16>, vector<32x128xbf16>, vector<4x128xf32> -> vector<4x128xf32>
    %181 = vector.broadcast %6 : vector<1x128xf32> to vector<4x128xf32>
    %182 = arith.addf %180, %181 : vector<4x128xf32>
    %cst_21 = arith.constant 0.000000e+00 : f32
    %183 = vector.broadcast %cst_21 : f32 to vector<4x128xf32>
    %184 = arith.maximumf %182, %183 : vector<4x128xf32>
    %185 = vector.broadcast %7 : vector<1x128xf32> to vector<4x128xf32>
    %186 = arith.mulf %184, %185 : vector<4x128xf32>
    %cst_22 = arith.constant dense<0.000000e+00> : vector<4xf32>
    %187 = vector.multi_reduction <add>, %186, %cst_22 [1] : vector<4x128xf32> to vector<4xf32>
    %188 = vector.shape_cast %187 : vector<4xf32> to vector<4x1xf32>
    %189 = vector.broadcast %8 : vector<1x1xf32> to vector<4x1xf32>
    %190 = arith.addf %188, %189 : vector<4x1xf32>
    %cst_23 = arith.constant 0.000000e+00 : f32
    %191 = vector.broadcast %cst_23 : f32 to vector<4x1xf32>
    %192 = arith.maximumf %190, %191 : vector<4x1xf32>
    %c0_24 = arith.constant 0 : index
    %c0_25 = arith.constant 0 : index
    %193 = vector.load %arg2[%c0_24, %c0_25] : memref<4x1xf32, #tpu.memory_space<vmem>>, vector<4x1xf32>
    tpu.vector_store %arg2[%c0_24, %c0_25], %192 {strides = array<i32>} : memref<4x1xf32, #tpu.memory_space<vmem>>, vector<4x1xf32>,
    return
  }
}

</mosaic_0001>

<llo_original>
// kernel: tpu_custom_call.1
$region0: #{tpu_custom_call.1}
  #allocation0 [shape = 'u32[]', space=smem, size = 0x4, offset = 0x4, fixed_abs, tag = 'smem constant byte address 0x4 - core index']
  #allocation1 [shape = 'u32[144,128]{1,0:T(1,128)}', space=vmem, size = 0x12000, scoped, tag = 'internal scratch']
  %s0 = inlined_call_operand.vmem [shape: f32[32,2], index: 0, kind: input, shape index: {}]
  %s1 = inlined_call_operand.hbm [shape: f32[80,128], index: 1, kind: input, shape index: {}]
  %s2 = inlined_call_operand.vmem [shape: f32[4,1], index: 2, kind: output, shape index: {}]
  %s3 = sld [smem:[#allocation0]]
  $region22: #{tpu_custom_call.1} parent=0
    _
  %s5 = ssub.s32 1, %s3
  %s6 = scalar_select 0, %s5, %s3
  $region1: #{tpu_custom_call.1} parent=0
    #allocation2 [shape = 'u8[40960]{0}', space=vmem, size = 0xa000, scoped, tag = 'input window, operand 1, single buffered']
    #allocation3 [shape = 's32[1]{0}', space=sflag, size = 0x4, scoped, tag = 'scoped memory for tpu_custom_call.1']
    %7 = vsyncpa [#allocation3], 0
    // Predicated region
    $region2: #{tpu_custom_call.1} parent=1 // pred_check
      _
    $region3: #{tpu_custom_call.1} parent=1 // pred_check_branch
      %9 = sbr.rel (0) target = $region5
    $region4: #{tpu_custom_call.1} parent=1 // pred_region
      _
    $region5: #{tpu_custom_call.1} parent=1 // pred_fallthru
      _
    // Predicated region
    $region6: #{tpu_custom_call.1} parent=1 // pred_check
      _
    $region7: #{tpu_custom_call.1} parent=1 // pred_check_branch
      %11 = sbr.rel (0) target = $region9
    $region8: #{tpu_custom_call.1} parent=1 // pred_region
      %s13 = ssub.s32 1280, 1280
      %14 = vsyncadd [#allocation3], %s13
      %s15 = sshll.u32 [#allocation2], 4
      %s16 = int_to_ptr.vmem [resolvable:$true] %s15
      %21 = dma.hbm_to_vmem [thread:$0]  %s1, 1280, %s16, [#allocation3], 128, 128, 8
    $region9: #{tpu_custom_call.1} parent=1 // pred_fallthru
      _
    // Predicated region
    $region10: #{tpu_custom_call.1} parent=1 // pred_check
      _
    $region11: #{tpu_custom_call.1} parent=1 // pred_check_branch
      %23 = sbr.rel (0) target = $region13
    $region12: #{tpu_custom_call.1} parent=1 // pred_region
      %24 = dma.done [#allocation3], 1280
    $region13: #{tpu_custom_call.1} parent=1 // pred_fallthru
      _
    %v26 = vld [vmem:[#allocation2] sm:$0x3]
    %v27 = vld [vmem:[#allocation2 + $0x2] sm:$0x1]
    %v28 = vld [vmem:[#allocation2 + $0x8] sm:$0xff]
    %v29 = vld [vmem:[#allocation2 + $0x10] sm:$0xff]
    %v30 = vld [vmem:[#allocation2 + $0x18] sm:$0xff]
    %v31 = vld [vmem:[#allocation2 + $0x20] sm:$0xff]
    %v32 = vpack.c.bf16 %v29, %v28
    %v33 = vpack.c.bf16 %v31, %v30
    %v34 = vld [vmem:[#allocation2 + $0x28] sm:$0xff]
    %v35 = vld [vmem:[#allocation2 + $0x30] sm:$0xff]
    %v36 = vld [vmem:[#allocation2 + $0x38] sm:$0xff]
    %v37 = vld [vmem:[#allocation2 + $0x40] sm:$0xff]
    %v38 = vpack.c.bf16 %v35, %v34
    %v39 = vpack.c.bf16 %v37, %v36
    %v40 = vld [vmem:[#allocation2 + $0x48] sm:$0x1]
    %v41 = vld [vmem:[#allocation2 + $0x49] sm:$0x1]
    %v42 = vld [vmem:[#allocation2 + $0x4a] sm:$0x1]
    %v43 = vld [vmem:[%s0] sm:$0xff]
    %v44 = vld [vmem:[%s0 + $0x8] sm:$0xff]
    %v45 = vld [vmem:[%s0 + $0x10] sm:$0xff]
    %v46 = vld [vmem:[%s0 + $0x18] sm:$0xff]
    %v47 = vlaneseq
    %v48 = vshrl.u32 %v47, 7
    %v49 = vsub.s32 0, %v48
    %v50 = vrot.slane %v27, %v49
    %vm51 = vcmask 15360
    %v53 = vsel %vm51, %v43, 0
    %v56 = vsel %vm51, %v44, 0
    %v59 = vsel %vm51, %v45, 0
    %v62 = vsel %vm51, %v46, 0
    %vm64 = vcmask 1041408
    %v66 = vsel %vm64, %v26, 0
    %68 = vmatprep.subr.mxu0 0.0
    %69 = vmatpush1.msra.mxu0 0.0
    %70 = vmatprep.subr.mxu0 0.0
    %71 = vmatpush1.msra.mxu0 0.0
    %72 = vmatprep.subr.mxu0 0.0
    %73 = vmatpush1.msra.mxu0 0.0
    %74 = vmatprep.subr.mxu0 0.0
    %75 = vmatpush1.msra.mxu0 0.0
    %76 = vmatprep.subr.mxu0 0.0
    %77 = vmatpush1.msra.mxu0 0.0
    %78 = vmatprep.subr.mxu0 0.0
    %79 = vmatpush1.msra.mxu0 0.0
    %80 = vmatprep.subr.mxu0 0.0
    %81 = vmatpush1.msra.mxu0 0.0
    %82 = vmatprep.subr.mxu0 0.0
    %83 = vmatpush1.msra.mxu0 0.0
    %84 = vmatprep.subr.mxu0 0.0
    %85 = vmatpush1.msra.mxu0 0.0
    %86 = vmatprep.subr.mxu0 0.0
    %87 = vmatpush1.msra.mxu0 0.0
    %88 = vmatprep.subr.mxu0 0.0
    %89 = vmatpush1.msra.mxu0 0.0
    %90 = vmatprep.subr.mxu0 0.0
    %91 = vmatpush1.msra.mxu0 0.0
    %92 = vmatprep.subr.mxu0 0.0
    %93 = vmatpush1.msra.mxu0 0.0
    %94 = vmatprep.subr.mxu0 0.0
    %95 = vmatpush1.msra.mxu0 0.0
    %96 = vmatprep.subr.mxu0 0.0
    %97 = vmatpush1.msra.mxu0 0.0
    %98 = vmatprep.subr.mxu0 0.0
    %99 = vmatpush1.msra.mxu0 %v66
    %100 = vmatprep.subr.mxu0 0.0
    %101 = vmatpush2.msra.mxu0 0.0
    %102 = vmatprep.subr.mxu0 0.0
    %103 = vmatpush2.msra.mxu0 0.0
    %104 = vmatprep.subr.mxu0 0.0
    %105 = vmatpush2.msra.mxu0 0.0
    %106 = vmatprep.subr.mxu0 0.0
    %107 = vmatpush2.msra.mxu0 0.0
    %108 = vmatprep.subr.mxu0 0.0
    %109 = vmatpush2.msra.mxu0 0.0
    %110 = vmatprep.subr.mxu0 0.0
    %111 = vmatpush2.msra.mxu0 0.0
    %112 = vmatprep.subr.mxu0 0.0
    %113 = vmatpush2.msra.mxu0 0.0
    %114 = vmatprep.subr.mxu0 0.0
    %115 = vmatpush2.msra.mxu0 0.0
    %116 = vmatprep.subr.mxu0 0.0
    %117 = vmatpush2.msra.mxu0 0.0
    %118 = vmatprep.subr.mxu0 0.0
    %119 = vmatpush2.msra.mxu0 0.0
    %120 = vmatprep.subr.mxu0 0.0
    %121 = vmatpush2.msra.mxu0 0.0
    %122 = vmatprep.subr.mxu0 0.0
    %123 = vmatpush2.msra.mxu0 0.0
    %124 = vmatprep.subr.mxu0 0.0
    %125 = vmatpush2.msra.mxu0 0.0
    %126 = vmatprep.subr.mxu0 0.0
    %127 = vmatpush2.msra.mxu0 0.0
    %128 = vmatprep.subr.mxu0 0.0
    %129 = vmatpush2.msra.mxu0 0.0
    %130 = vmatprep.subr.mxu0 0.0
    %131 = vmatpush2.msra.mxu0 0.0
    %132 = vmatprep.mubr.f32.mxu0 0.0
    %133 = vmatmul.mubr.f32.gmra.mxu0 %v53
    %v134 = vpop.f32.mrf.mxu0
    %v135 = vadd.f32 %v50, %v134
    %v136 = vpop.f32.mrf.mxu0
    %137 = vmatprep.mubr.f32.mxu0 0.0
    %138 = vmatmul.mubr.f32.gmra.mxu0 %v56
    %v139 = vpop.f32.mrf.mxu0
    %v140 = vadd.f32 %v50, %v139
    %v141 = vpop.f32.mrf.mxu0
    %142 = vmatprep.mubr.f32.mxu0 0.0
    %143 = vmatmul.mubr.f32.gmra.mxu0 %v59
    %v144 = vpop.f32.mrf.mxu0
    %v145 = vadd.f32 %v50, %v144
    %v146 = vpop.f32.mrf.mxu0
    %147 = vmatprep.mubr.f32.mxu0 0.0
    %148 = vmatmul.mubr.f32.gmra.mxu0 %v62
    %v149 = vpop.f32.mrf.mxu0
    %v150 = vadd.f32 %v50, %v149
    %v151 = vpop.f32.mrf.mxu0
    %152 = vdwg.mxu0
    %v153 = vlaneseq
    %v154 = vand.u32 %v153, 127
    %vm155 = vcmp.ge.s32.totalorder %v154, 64
    %vm156 = vcmp.lt.s32.totalorder %v154, 96
    %vm157 = vmand %vm155, %vm156
    %v158 = vsel %vm157, 1.0, 0.5
    %v159 = vsel %vm157, 0.0, 0.5
    %v160 = vmul.f32 %v135, %v158
    %v161 = vtanh.pop %v160
    %v162 = vmul.f32 %v161, %v158
    %v163 = vadd.f32 %v162, %v159
    %165 = vrot.lane.b32.xlu0 %v163, 64
    %v166 = vpop.permute.xlu0 %165
    %v168 = vmul.f32 %v163, %v166
    %v169 = vtanh.pop %v168
    %171 = vrot.lane.b32.xlu0 %v169, 96
    %v172 = vpop.permute.xlu0 %171
    %v174 = vmul.f32 %v163, %v172
    %v175 = vpack.c.bf16 %v174, %v174
    %177 = vrot.lane.b32.xlu0 %v175, 32
    %v178 = vpop.permute.xlu0 %177
    %vm179 = vcmask 261120
    %v181 = vsel %vm179, %v178, 0
    %183 = vmatprep.subr.bf16.mxu0 0
    %184 = vmatpush1.bf16.msra.mxu0 0
    %185 = vmatprep.subr.bf16.mxu0 0
    %186 = vmatpush1.bf16.msra.mxu0 0
    %187 = vmatprep.subr.bf16.mxu0 0
    %188 = vmatpush1.bf16.msra.mxu0 0
    %189 = vmatprep.subr.bf16.mxu0 0
    %190 = vmatpush1.bf16.msra.mxu0 0
    %191 = vmatprep.subr.bf16.mxu0 0
    %192 = vmatpush1.bf16.msra.mxu0 0
    %193 = vmatprep.subr.bf16.mxu0 0
    %194 = vmatpush1.bf16.msra.mxu0 0
    %195 = vmatprep.subr.bf16.mxu0 0
    %196 = vmatpush1.bf16.msra.mxu0 %v33
    %197 = vmatprep.subr.bf16.mxu0 0
    %198 = vmatpush1.bf16.msra.mxu0 %v32
    %199 = vmatprep.subr.bf16.mxu0 0
    %200 = vmatpush2.bf16.msra.mxu0 0
    %201 = vmatprep.subr.bf16.mxu0 0
    %202 = vmatpush2.bf16.msra.mxu0 0
    %203 = vmatprep.subr.bf16.mxu0 0
    %204 = vmatpush2.bf16.msra.mxu0 0
    %205 = vmatprep.subr.bf16.mxu0 0
    %206 = vmatpush2.bf16.msra.mxu0 0
    %207 = vmatprep.subr.bf16.mxu0 0
    %208 = vmatpush2.bf16.msra.mxu0 0
    %209 = vmatprep.subr.bf16.mxu0 0
    %210 = vmatpush2.bf16.msra.mxu0 0
    %211 = vmatprep.subr.bf16.mxu0 0
    %212 = vmatpush2.bf16.msra.mxu0 0
    %213 = vmatprep.subr.bf16.mxu0 0
    %214 = vmatpush2.bf16.msra.mxu0 0
    %215 = vmatprep.mubr.bf16.mxu0 0
    %216 = vmatmul.mubr.bf16.gmra.mxu0 %v181
    %v217 = vpop.f32.mrf.mxu0
    %v218 = vadd.f32 0.0, %v217
    %v219 = vpop.f32.mrf.mxu0
    %v220 = vpop.f32.mrf.mxu0
    %v221 = vpop.f32.mrf.mxu0
    %222 = vdwg.mxu0
    %v224 = vrot.slane %v218, 4
    %v226 = vadd.f32 %v135, %v224
    %v227 = vmul.f32 %v226, %v158
    %v228 = vtanh.pop %v227
    %v229 = vmul.f32 %v228, %v158
    %v230 = vadd.f32 %v229, %v159
    %v232 = vrot.slane %v168, 4
    %233 = vrot.lane.b32.xlu0 %v232, 32
    %v234 = vpop.permute.xlu0 %233
    %v236 = vmul.f32 %v230, %v234
    %238 = vrot.lane.b32.xlu0 %v230, 64
    %v239 = vpop.permute.xlu0 %238
    %v241 = vmul.f32 %v230, %v239
    %243 = vrot.lane.b32.xlu0 %v241, 32
    %v244 = vpop.permute.xlu0 %243
    %v246 = vadd.f32 %v236, %v244
    %v247 = vtanh.pop %v246
    %249 = vrot.lane.b32.xlu0 %v247, 64
    %v250 = vpop.permute.xlu0 %249
    %v252 = vmul.f32 %v230, %v250
    %v253 = vpack.c.bf16 %v252, %v252
    %v255 = vrot.slane %v253, 2
    %256 = vrot.lane.b32.xlu0 %v255, 32
    %v257 = vpop.permute.xlu0 %256
    %v259 = vsel %vm179, %v257, 0
    %261 = vmatprep.subr.bf16.mxu0 0
    %262 = vmatpush1.bf16.msra.mxu0 0
    %263 = vmatprep.subr.bf16.mxu0 0
    %264 = vmatpush1.bf16.msra.mxu0 0
    %265 = vmatprep.subr.bf16.mxu0 0
    %266 = vmatpush1.bf16.msra.mxu0 0
    %267 = vmatprep.subr.bf16.mxu0 0
    %268 = vmatpush1.bf16.msra.mxu0 0
    %269 = vmatprep.subr.bf16.mxu0 0
    %270 = vmatpush1.bf16.msra.mxu0 0
    %271 = vmatprep.subr.bf16.mxu0 0
    %272 = vmatpush1.bf16.msra.mxu0 0
    %273 = vmatprep.subr.bf16.mxu0 0
    %274 = vmatpush1.bf16.msra.mxu0 %v33
    %275 = vmatprep.subr.bf16.mxu0 0
    %276 = vmatpush1.bf16.msra.mxu0 %v32
    %277 = vmatprep.subr.bf16.mxu0 0
    %278 = vmatpush2.bf16.msra.mxu0 0
    %279 = vmatprep.subr.bf16.mxu0 0
    %280 = vmatpush2.bf16.msra.mxu0 0
    %281 = vmatprep.subr.bf16.mxu0 0
    %282 = vmatpush2.bf16.msra.mxu0 0
    %283 = vmatprep.subr.bf16.mxu0 0
    %284 = vmatpush2.bf16.msra.mxu0 0
    %285 = vmatprep.subr.bf16.mxu0 0
    %286 = vmatpush2.bf16.msra.mxu0 0
    %287 = vmatprep.subr.bf16.mxu0 0
    %288 = vmatpush2.bf16.msra.mxu0 0
    %289 = vmatprep.subr.bf16.mxu0 0
    %290 = vmatpush2.bf16.msra.mxu0 0
    %291 = vmatprep.subr.bf16.mxu0 0
    %292 = vmatpush2.bf16.msra.mxu0 0
    %293 = vmatprep.mubr.bf16.mxu0 0
    %294 = vmatmul.mubr.bf16.gmra.mxu0 %v259
    %v295 = vpop.f32.mrf.mxu0
    %v296 = vadd.f32 0.0, %v295
    %v297 = vpop.f32.mrf.mxu0
    %v298 = vpop.f32.mrf.mxu0
    %v299 = vpop.f32.mrf.mxu0
    %300 = vdwg.mxu0
    %v301 = vadd.f32 %v140, %v296
    %v302 = vmul.f32 %v301, %v158
    %v303 = vtanh.pop %v302
    %v304 = vmul.f32 %v303, %v158
    %v305 = vadd.f32 %v304, %v159
    %v307 = vrot.slane %v246, 4
    %v309 = vmul.f32 %v305, %v307
    %311 = vrot.lane.b32.xlu0 %v305, 64
    %v312 = vpop.permute.xlu0 %311
    %v314 = vmul.f32 %v305, %v312
    %316 = vrot.lane.b32.xlu0 %v314, 32
    %v317 = vpop.permute.xlu0 %316
    %v319 = vadd.f32 %v309, %v317
    %v320 = vtanh.pop %v319
    %322 = vrot.lane.b32.xlu0 %v320, 64
    %v323 = vpop.permute.xlu0 %322
    %v325 = vmul.f32 %v305, %v323
    %v326 = vpack.c.bf16 %v325, %v325
    %328 = vrot.lane.b32.xlu0 %v326, 32
    %v329 = vpop.permute.xlu0 %328
    %v331 = vsel %vm179, %v329, 0
    %333 = vmatprep.subr.bf16.mxu0 0
    %334 = vmatpush1.bf16.msra.mxu0 0
    %335 = vmatprep.subr.bf16.mxu0 0
    %336 = vmatpush1.bf16.msra.mxu0 0
    %337 = vmatprep.subr.bf16.mxu0 0
    %338 = vmatpush1.bf16.msra.mxu0 0
    %339 = vmatprep.subr.bf16.mxu0 0
    %340 = vmatpush1.bf16.msra.mxu0 0
    %341 = vmatprep.subr.bf16.mxu0 0
    %342 = vmatpush1.bf16.msra.mxu0 0
    %343 = vmatprep.subr.bf16.mxu0 0
    %344 = vmatpush1.bf16.msra.mxu0 0
    %345 = vmatprep.subr.bf16.mxu0 0
    %346 = vmatpush1.bf16.msra.mxu0 %v33
    %347 = vmatprep.subr.bf16.mxu0 0
    %348 = vmatpush1.bf16.msra.mxu0 %v32
    %349 = vmatprep.subr.bf16.mxu0 0
    %350 = vmatpush2.bf16.msra.mxu0 0
    %351 = vmatprep.subr.bf16.mxu0 0
    %352 = vmatpush2.bf16.msra.mxu0 0
    %353 = vmatprep.subr.bf16.mxu0 0
    %354 = vmatpush2.bf16.msra.mxu0 0
    %355 = vmatprep.subr.bf16.mxu0 0
    %356 = vmatpush2.bf16.msra.mxu0 0
    %357 = vmatprep.subr.bf16.mxu0 0
    %358 = vmatpush2.bf16.msra.mxu0 0
    %359 = vmatprep.subr.bf16.mxu0 0
    %360 = vmatpush2.bf16.msra.mxu0 0
    %361 = vmatprep.subr.bf16.mxu0 0
    %362 = vmatpush2.bf16.msra.mxu0 0
    %363 = vmatprep.subr.bf16.mxu0 0
    %364 = vmatpush2.bf16.msra.mxu0 0
    %365 = vmatprep.mubr.bf16.mxu0 0
    %366 = vmatmul.mubr.bf16.gmra.mxu0 %v331
    %v367 = vpop.f32.mrf.mxu0
    %v368 = vadd.f32 0.0, %v367
    %v369 = vpop.f32.mrf.mxu0
    %v370 = vpop.f32.mrf.mxu0
    %v371 = vpop.f32.mrf.mxu0
    %372 = vdwg.mxu0
    %v374 = vrot.slane %v368, 4
    %v376 = vadd.f32 %v140, %v374
    %v377 = vmul.f32 %v376, %v158
    %v378 = vtanh.pop %v377
    %v379 = vmul.f32 %v378, %v158
    %v380 = vadd.f32 %v379, %v159
    %v382 = vrot.slane %v319, 4
    %v384 = vmul.f32 %v380, %v382
    %386 = vrot.lane.b32.xlu0 %v380, 64
    %v387 = vpop.permute.xlu0 %386
    %v389 = vmul.f32 %v380, %v387
    %391 = vrot.lane.b32.xlu0 %v389, 32
    %v392 = vpop.permute.xlu0 %391
    %v394 = vadd.f32 %v384, %v392
    %v395 = vtanh.pop %v394
    %397 = vrot.lane.b32.xlu0 %v395, 64
    %v398 = vpop.permute.xlu0 %397
    %v400 = vmul.f32 %v380, %v398
    %v401 = vpack.c.bf16 %v400, %v400
    %v403 = vrot.slane %v401, 2
    %404 = vrot.lane.b32.xlu0 %v403, 32
    %v405 = vpop.permute.xlu0 %404
    %v407 = vsel %vm179, %v405, 0
    %409 = vmatprep.subr.bf16.mxu0 0
    %410 = vmatpush1.bf16.msra.mxu0 0
    %411 = vmatprep.subr.bf16.mxu0 0
    %412 = vmatpush1.bf16.msra.mxu0 0
    %413 = vmatprep.subr.bf16.mxu0 0
    %414 = vmatpush1.bf16.msra.mxu0 0
    %415 = vmatprep.subr.bf16.mxu0 0
    %416 = vmatpush1.bf16.msra.mxu0 0
    %417 = vmatprep.subr.bf16.mxu0 0
    %418 = vmatpush1.bf16.msra.mxu0 0
    %419 = vmatprep.subr.bf16.mxu0 0
    %420 = vmatpush1.bf16.msra.mxu0 0
    %421 = vmatprep.subr.bf16.mxu0 0
    %422 = vmatpush1.bf16.msra.mxu0 %v33
    %423 = vmatprep.subr.bf16.mxu0 0
    %424 = vmatpush1.bf16.msra.mxu0 %v32
    %425 = vmatprep.subr.bf16.mxu0 0
    %426 = vmatpush2.bf16.msra.mxu0 0
    %427 = vmatprep.subr.bf16.mxu0 0
    %428 = vmatpush2.bf16.msra.mxu0 0
    %429 = vmatprep.subr.bf16.mxu0 0
    %430 = vmatpush2.bf16.msra.mxu0 0
    %431 = vmatprep.subr.bf16.mxu0 0
    %432 = vmatpush2.bf16.msra.mxu0 0
    %433 = vmatprep.subr.bf16.mxu0 0
    %434 = vmatpush2.bf16.msra.mxu0 0
    %435 = vmatprep.subr.bf16.mxu0 0
    %436 = vmatpush2.bf16.msra.mxu0 0
    %437 = vmatprep.subr.bf16.mxu0 0
    %438 = vmatpush2.bf16.msra.mxu0 0
    %439 = vmatprep.subr.bf16.mxu0 0
    %440 = vmatpush2.bf16.msra.mxu0 0
    %441 = vmatprep.mubr.bf16.mxu0 0
    %442 = vmatmul.mubr.bf16.gmra.mxu0 %v407
    %v443 = vpop.f32.mrf.mxu0
    %v444 = vadd.f32 0.0, %v443
    %v445 = vpop.f32.mrf.mxu0
    %v446 = vpop.f32.mrf.mxu0
    %v447 = vpop.f32.mrf.mxu0
    %448 = vdwg.mxu0
    %v449 = vadd.f32 %v145, %v444
    %v450 = vmul.f32 %v449, %v158
    %v451 = vtanh.pop %v450
    %v452 = vmul.f32 %v451, %v158
    %v453 = vadd.f32 %v452, %v159
    %v455 = vrot.slane %v394, 4
    %v457 = vmul.f32 %v453, %v455
    %459 = vrot.lane.b32.xlu0 %v453, 64
    %v460 = vpop.permute.xlu0 %459
    %v462 = vmul.f32 %v453, %v460
    %464 = vrot.lane.b32.xlu0 %v462, 32
    %v465 = vpop.permute.xlu0 %464
    %v467 = vadd.f32 %v457, %v465
    %v468 = vtanh.pop %v467
    %470 = vrot.lane.b32.xlu0 %v468, 64
    %v471 = vpop.permute.xlu0 %470
    %v473 = vmul.f32 %v453, %v471
    %v474 = vpack.c.bf16 %v473, %v473
    %476 = vrot.lane.b32.xlu0 %v474, 32
    %v477 = vpop.permute.xlu0 %476
    %v479 = vsel %vm179, %v477, 0
    %481 = vmatprep.subr.bf16.mxu0 0
    %482 = vmatpush1.bf16.msra.mxu0 0
    %483 = vmatprep.subr.bf16.mxu0 0
    %484 = vmatpush1.bf16.msra.mxu0 0
    %485 = vmatprep.subr.bf16.mxu0 0
    %486 = vmatpush1.bf16.msra.mxu0 0
    %487 = vmatprep.subr.bf16.mxu0 0
    %488 = vmatpush1.bf16.msra.mxu0 0
    %489 = vmatprep.subr.bf16.mxu0 0
    %490 = vmatpush1.bf16.msra.mxu0 0
    %491 = vmatprep.subr.bf16.mxu0 0
    %492 = vmatpush1.bf16.msra.mxu0 0
    %493 = vmatprep.subr.bf16.mxu0 0
    %494 = vmatpush1.bf16.msra.mxu0 %v33
    %495 = vmatprep.subr.bf16.mxu0 0
    %496 = vmatpush1.bf16.msra.mxu0 %v32
    %497 = vmatprep.subr.bf16.mxu0 0
    %498 = vmatpush2.bf16.msra.mxu0 0
    %499 = vmatprep.subr.bf16.mxu0 0
    %500 = vmatpush2.bf16.msra.mxu0 0
    %501 = vmatprep.subr.bf16.mxu0 0
    %502 = vmatpush2.bf16.msra.mxu0 0
    %503 = vmatprep.subr.bf16.mxu0 0
    %504 = vmatpush2.bf16.msra.mxu0 0
    %505 = vmatprep.subr.bf16.mxu0 0
    %506 = vmatpush2.bf16.msra.mxu0 0
    %507 = vmatprep.subr.bf16.mxu0 0
    %508 = vmatpush2.bf16.msra.mxu0 0
    %509 = vmatprep.subr.bf16.mxu0 0
    %510 = vmatpush2.bf16.msra.mxu0 0
    %511 = vmatprep.subr.bf16.mxu0 0
    %512 = vmatpush2.bf16.msra.mxu0 0
    %513 = vmatprep.mubr.bf16.mxu0 0
    %514 = vmatmul.mubr.bf16.gmra.mxu0 %v479
    %v515 = vpop.f32.mrf.mxu0
    %v516 = vadd.f32 0.0, %v515
    %v517 = vpop.f32.mrf.mxu0
    %v518 = vpop.f32.mrf.mxu0
    %v519 = vpop.f32.mrf.mxu0
    %520 = vdwg.mxu0
    %v522 = vrot.slane %v516, 4
    %v524 = vadd.f32 %v145, %v522
    %v525 = vmul.f32 %v524, %v158
    %v526 = vtanh.pop %v525
    %v527 = vmul.f32 %v526, %v158
    %v528 = vadd.f32 %v527, %v159
    %v530 = vrot.slane %v467, 4
    %v532 = vmul.f32 %v528, %v530
    %534 = vrot.lane.b32.xlu0 %v528, 64
    %v535 = vpop.permute.xlu0 %534
    %v537 = vmul.f32 %v528, %v535
    %539 = vrot.lane.b32.xlu0 %v537, 32
    %v540 = vpop.permute.xlu0 %539
    %v542 = vadd.f32 %v532, %v540
    %v543 = vtanh.pop %v542
    %545 = vrot.lane.b32.xlu0 %v543, 64
    %v546 = vpop.permute.xlu0 %545
    %v548 = vmul.f32 %v528, %v546
    %v549 = vpack.c.bf16 %v548, %v548
    %v551 = vrot.slane %v549, 2
    %552 = vrot.lane.b32.xlu0 %v551, 32
    %v553 = vpop.permute.xlu0 %552
    %v555 = vsel %vm179, %v553, 0
    %557 = vmatprep.subr.bf16.mxu0 0
    %558 = vmatpush1.bf16.msra.mxu0 0
    %559 = vmatprep.subr.bf16.mxu0 0
    %560 = vmatpush1.bf16.msra.mxu0 0
    %561 = vmatprep.subr.bf16.mxu0 0
    %562 = vmatpush1.bf16.msra.mxu0 0
    %563 = vmatprep.subr.bf16.mxu0 0
    %564 = vmatpush1.bf16.msra.mxu0 0
    %565 = vmatprep.subr.bf16.mxu0 0
    %566 = vmatpush1.bf16.msra.mxu0 0
    %567 = vmatprep.subr.bf16.mxu0 0
    %568 = vmatpush1.bf16.msra.mxu0 0
    %569 = vmatprep.subr.bf16.mxu0 0
    %570 = vmatpush1.bf16.msra.mxu0 %v33
    %571 = vmatprep.subr.bf16.mxu0 0
    %572 = vmatpush1.bf16.msra.mxu0 %v32
    %573 = vmatprep.subr.bf16.mxu0 0
    %574 = vmatpush2.bf16.msra.mxu0 0
    %575 = vmatprep.subr.bf16.mxu0 0
    %576 = vmatpush2.bf16.msra.mxu0 0
    %577 = vmatprep.subr.bf16.mxu0 0
    %578 = vmatpush2.bf16.msra.mxu0 0
    %579 = vmatprep.subr.bf16.mxu0 0
    %580 = vmatpush2.bf16.msra.mxu0 0
    %581 = vmatprep.subr.bf16.mxu0 0
    %582 = vmatpush2.bf16.msra.mxu0 0
    %583 = vmatprep.subr.bf16.mxu0 0
    %584 = vmatpush2.bf16.msra.mxu0 0
    %585 = vmatprep.subr.bf16.mxu0 0
    %586 = vmatpush2.bf16.msra.mxu0 0
    %587 = vmatprep.subr.bf16.mxu0 0
    %588 = vmatpush2.bf16.msra.mxu0 0
    %589 = vmatprep.mubr.bf16.mxu0 0
    %590 = vmatmul.mubr.bf16.gmra.mxu0 %v555
    %v591 = vpop.f32.mrf.mxu0
    %v592 = vadd.f32 0.0, %v591
    %v593 = vpop.f32.mrf.mxu0
    %v594 = vpop.f32.mrf.mxu0
    %v595 = vpop.f32.mrf.mxu0
    %596 = vdwg.mxu0
    %v597 = vadd.f32 %v150, %v592
    %v598 = vmul.f32 %v597, %v158
    %v599 = vtanh.pop %v598
    %v600 = vmul.f32 %v599, %v158
    %v601 = vadd.f32 %v600, %v159
    %v603 = vrot.slane %v542, 4
    %v605 = vmul.f32 %v601, %v603
    %607 = vrot.lane.b32.xlu0 %v601, 64
    %v608 = vpop.permute.xlu0 %607
    %v610 = vmul.f32 %v601, %v608
    %612 = vrot.lane.b32.xlu0 %v610, 32
    %v613 = vpop.permute.xlu0 %612
    %v615 = vadd.f32 %v605, %v613
    %v616 = vtanh.pop %v615
    %618 = vrot.lane.b32.xlu0 %v616, 64
    %v619 = vpop.permute.xlu0 %618
    %v621 = vmul.f32 %v601, %v619
    %v622 = vpack.c.bf16 %v621, %v621
    %624 = vrot.lane.b32.xlu0 %v622, 32
    %v625 = vpop.permute.xlu0 %624
    %v627 = vsel %vm179, %v625, 0
    %629 = vmatprep.subr.bf16.mxu0 0
    %630 = vmatpush1.bf16.msra.mxu0 0
    %631 = vmatprep.subr.bf16.mxu0 0
    %632 = vmatpush1.bf16.msra.mxu0 0
    %633 = vmatprep.subr.bf16.mxu0 0
    %634 = vmatpush1.bf16.msra.mxu0 0
    %635 = vmatprep.subr.bf16.mxu0 0
    %636 = vmatpush1.bf16.msra.mxu0 0
    %637 = vmatprep.subr.bf16.mxu0 0
    %638 = vmatpush1.bf16.msra.mxu0 0
    %639 = vmatprep.subr.bf16.mxu0 0
    %640 = vmatpush1.bf16.msra.mxu0 0
    %641 = vmatprep.subr.bf16.mxu0 0
    %642 = vmatpush1.bf16.msra.mxu0 %v33
    %643 = vmatprep.subr.bf16.mxu0 0
    %644 = vmatpush1.bf16.msra.mxu0 %v32
    %645 = vmatprep.subr.bf16.mxu0 0
    %646 = vmatpush2.bf16.msra.mxu0 0
    %647 = vmatprep.subr.bf16.mxu0 0
    %648 = vmatpush2.bf16.msra.mxu0 0
    %649 = vmatprep.subr.bf16.mxu0 0
    %650 = vmatpush2.bf16.msra.mxu0 0
    %651 = vmatprep.subr.bf16.mxu0 0
    %652 = vmatpush2.bf16.msra.mxu0 0
    %653 = vmatprep.subr.bf16.mxu0 0
    %654 = vmatpush2.bf16.msra.mxu0 0
    %655 = vmatprep.subr.bf16.mxu0 0
    %656 = vmatpush2.bf16.msra.mxu0 0
    %657 = vmatprep.subr.bf16.mxu0 0
    %658 = vmatpush2.bf16.msra.mxu0 0
    %659 = vmatprep.subr.bf16.mxu0 0
    %660 = vmatpush2.bf16.msra.mxu0 0
    %661 = vmatprep.mubr.bf16.mxu0 0
    %662 = vmatmul.mubr.bf16.gmra.mxu0 %v627
    %v663 = vpop.f32.mrf.mxu0
    %v664 = vadd.f32 0.0, %v663
    %v665 = vpop.f32.mrf.mxu0
    %v666 = vpop.f32.mrf.mxu0
    %v667 = vpop.f32.mrf.mxu0
    %668 = vdwg.mxu0
    %v670 = vrot.slane %v664, 4
    %v672 = vadd.f32 %v150, %v670
    %v673 = vmul.f32 %v672, %v158
    %v674 = vtanh.pop %v673
    %v675 = vmul.f32 %v674, %v158
    %v676 = vadd.f32 %v675, %v159
    %v678 = vrot.slane %v615, 4
    %v680 = vmul.f32 %v676, %v678
    %682 = vrot.lane.b32.xlu0 %v676, 64
    %v683 = vpop.permute.xlu0 %682
    %v685 = vmul.f32 %v676, %v683
    %687 = vrot.lane.b32.xlu0 %v685, 32
    %v688 = vpop.permute.xlu0 %687
    %v690 = vadd.f32 %v680, %v688
    %v691 = vtanh.pop %v690
    %693 = vrot.lane.b32.xlu0 %v691, 64
    %v694 = vpop.permute.xlu0 %693
    %v696 = vmul.f32 %v676, %v694
    %v697 = vpack.c.bf16 %v696, %v696
    %v698 = vlaneseq
    %v699 = vshrl.u32 %v698, 7
    %v700 = vsub.s32 0, %v699
    %v701 = vrot.slane %v40, %v700
    %v703 = vrot.slane %v697, 2
    %704 = vrot.lane.b32.xlu0 %v703, 32
    %v705 = vpop.permute.xlu0 %704
    %v707 = vsel %vm179, %v705, 0
    %709 = vmatprep.subr.bf16.mxu0 0
    %710 = vmatpush1.bf16.msra.mxu0 0
    %711 = vmatprep.subr.bf16.mxu0 0
    %712 = vmatpush1.bf16.msra.mxu0 0
    %713 = vmatprep.subr.bf16.mxu0 0
    %714 = vmatpush1.bf16.msra.mxu0 0
    %715 = vmatprep.subr.bf16.mxu0 0
    %716 = vmatpush1.bf16.msra.mxu0 0
    %717 = vmatprep.subr.bf16.mxu0 0
    %718 = vmatpush1.bf16.msra.mxu0 0
    %719 = vmatprep.subr.bf16.mxu0 0
    %720 = vmatpush1.bf16.msra.mxu0 0
    %721 = vmatprep.subr.bf16.mxu0 0
    %722 = vmatpush1.bf16.msra.mxu0 %v39
    %723 = vmatprep.subr.bf16.mxu0 0
    %724 = vmatpush1.bf16.msra.mxu0 %v38
    %725 = vmatprep.subr.bf16.mxu0 0
    %726 = vmatpush2.bf16.msra.mxu0 0
    %727 = vmatprep.subr.bf16.mxu0 0
    %728 = vmatpush2.bf16.msra.mxu0 0
    %729 = vmatprep.subr.bf16.mxu0 0
    %730 = vmatpush2.bf16.msra.mxu0 0
    %731 = vmatprep.subr.bf16.mxu0 0
    %732 = vmatpush2.bf16.msra.mxu0 0
    %733 = vmatprep.subr.bf16.mxu0 0
    %734 = vmatpush2.bf16.msra.mxu0 0
    %735 = vmatprep.subr.bf16.mxu0 0
    %736 = vmatpush2.bf16.msra.mxu0 0
    %737 = vmatprep.subr.bf16.mxu0 0
    %738 = vmatpush2.bf16.msra.mxu0 0
    %739 = vmatprep.subr.bf16.mxu0 0
    %740 = vmatpush2.bf16.msra.mxu0 0
    %741 = vmatprep.mubr.bf16.mxu0 0
    %742 = vmatmul.mubr.bf16.gmra.mxu0 %v707
    %v743 = vpop.f32.mrf.mxu0
    %v744 = vadd.f32 %v701, %v743
    %v745 = vpop.f32.mrf.mxu0
    %v746 = vpop.f32.mrf.mxu0
    %v747 = vpop.f32.mrf.mxu0
    %748 = vdwg.mxu0
    %v749 = vmax.f32 %v744, 0.0
    %v750 = vlaneseq
    %v751 = vshrl.u32 %v750, 7
    %v752 = vsub.s32 0, %v751
    %v753 = vrot.slane %v41, %v752
    %v754 = vmul.f32 %v749, %v753
    %vm755 = vcmask 1043456
    %v756 = vsel %vm755, %v754, 0.0
    %757 = vadd.xlane.f32.xlu0 %v756
    %v758 = vpop.xlane.xlu0 %757
    %v759 = vlaneseq
    %v760 = vshrl.u32 %v759, 7
    %v761 = vsub.s32 0, %v760
    %v762 = vrot.slane %v42, %v761
    %v763 = vadd.f32 %v758, %v762
    %v764 = vmax.f32 %v763, 0.0
    %vm765 = vcmask 3072
    %766 = vst.msk [vmem:[%s2] sm:$0xf] %vm765, %v764
    // Predicated region
    $region14: #{tpu_custom_call.1} parent=1 // pred_check
      _
    $region15: #{tpu_custom_call.1} parent=1 // pred_check_branch
      %768 = sbr.rel (0) target = $region17
    $region16: #{tpu_custom_call.1} parent=1 // pred_region
      _
    $region17: #{tpu_custom_call.1} parent=1 // pred_fallthru
      _
    // Predicated region
    $region18: #{tpu_custom_call.1} parent=1 // pred_check
      _
    $region19: #{tpu_custom_call.1} parent=1 // pred_check_branch
      %770 = sbr.rel (0) target = $region21
    $region20: #{tpu_custom_call.1} parent=1 // pred_region
      _
    $region21: #{tpu_custom_call.1} parent=1 // pred_fallthru
      _
    %771 = vsyncpa [#allocation3], 1

</llo_original>
